<compile_context>
chip_gen: v6e
topology: v6e:2x2x1
jax: 0.10.0
libtpu: 0.0.40
codegen_flags: <defaults>
</compile_context>

<pallas_src>
import functools

import jax
import jax.numpy as jnp
import numpy as np
from jax import lax
from jax.experimental import pallas as pl
from jax.experimental.pallas import tpu as pltpu

_LANE = 128


def _pad_to_lane(q):
    return max(_LANE, ((q + _LANE - 1) // _LANE) * _LANE)


def _nbytes(*arrays):
    return int(sum(int(np.prod(a.shape)) * np.dtype(a.dtype).itemsize
                   for a in arrays))


# ----------------------------------------------------------------------------
# Pallas kernels: one MXU matmul (bf16 operands, f32 accumulate) plus fused
# bias / residual / ReLU epilogue, writing lane-dense (multiple-of-128) slabs.
# ----------------------------------------------------------------------------
def _matmul_epilogue_kernel(x_ref, w_ref, b_ref, *refs, apply_relu,
                            has_residual):
    if has_residual:
        res_ref, out_ref = refs
    else:
        (out_ref,) = refs
    acc = jnp.dot(x_ref[...], w_ref[...], preferred_element_type=jnp.float32)
    acc = acc + b_ref[...]
    if has_residual:
        acc = acc + res_ref[...].astype(jnp.float32)
    if apply_relu:
        acc = jnp.maximum(acc, 0.0)
    out_ref[...] = acc.astype(out_ref.dtype)


def _dual_matmul_kernel(x_ref, w_ref, b_ref, out1_ref, out2_ref):
    """Fused conv1 + shortcut: one matmul, two lane-aligned outputs.
    Columns [0, Qp): conv1 (+ReLU); [Qp, 2*Qp): shortcut (no ReLU)."""
    qp = out1_ref.shape[1]                        # multiple of 128 -> clean split
    acc = jnp.dot(x_ref[...], w_ref[...], preferred_element_type=jnp.float32)
    acc = acc + b_ref[...]
    out1_ref[...] = jnp.maximum(acc[:, :qp], 0.0).astype(out1_ref.dtype)
    out2_ref[...] = acc[:, qp:].astype(out2_ref.dtype)


def _run_matmul(xk, w, b, *, residual=None, apply_relu, out_dtype):
    M, K = xk.shape
    Q = w.shape[1]
    kernel = functools.partial(_matmul_epilogue_kernel, apply_relu=apply_relu,
                               has_residual=residual is not None)
    in_specs = [pl.BlockSpec((M, K), lambda i: (0, 0)),
                pl.BlockSpec((K, Q), lambda i: (0, 0)),
                pl.BlockSpec((1, Q), lambda i: (0, 0))]
    args = [xk, w, b]
    if residual is not None:
        in_specs.append(pl.BlockSpec((M, Q), lambda i: (0, 0)))
        args.append(residual)
    bytes_accessed = _nbytes(*args) + M * Q * np.dtype(out_dtype).itemsize
    return pl.pallas_call(
        kernel,
        out_shape=jax.ShapeDtypeStruct((M, Q), out_dtype),
        grid=(1,),
        in_specs=in_specs,
        out_specs=pl.BlockSpec((M, Q), lambda i: (0, 0)),
        compiler_params=pltpu.CompilerParams(
            dimension_semantics=("arbitrary",)),
        cost_estimate=pl.CostEstimate(flops=2 * M * K * Q, transcendentals=0,
                                      bytes_accessed=int(bytes_accessed)),
    )(*args)


def _run_dual_matmul(xk, w, b, *, out_dtype):
    M, K = xk.shape
    Q2 = w.shape[1]
    Qp = Q2 // 2
    bytes_accessed = _nbytes(xk, w, b) + 2 * M * Qp * np.dtype(out_dtype).itemsize
    return pl.pallas_call(
        _dual_matmul_kernel,
        out_shape=(jax.ShapeDtypeStruct((M, Qp), out_dtype),
                   jax.ShapeDtypeStruct((M, Qp), out_dtype)),
        grid=(1,),
        in_specs=[pl.BlockSpec((M, K), lambda i: (0, 0)),
                  pl.BlockSpec((K, Q2), lambda i: (0, 0)),
                  pl.BlockSpec((1, Q2), lambda i: (0, 0))],
        out_specs=(pl.BlockSpec((M, Qp), lambda i: (0, 0)),
                   pl.BlockSpec((M, Qp), lambda i: (0, 0))),
        compiler_params=pltpu.CompilerParams(
            dimension_semantics=("arbitrary",)),
        cost_estimate=pl.CostEstimate(flops=2 * M * K * Q2, transcendentals=0,
                                      bytes_accessed=int(bytes_accessed)),
    )(xk, w, b)


# ----------------------------------------------------------------------------
# Plain-JAX glue: kh-im2col of the (already dilated/padded) NHWC input.
# ----------------------------------------------------------------------------
def _im2col_kh(xp_nhwc, KH, Ho):
    """(N, Hp, Wp, C) -> (N*Ho, KH*Wp*C): fold the KH taps into contraction K."""
    N, Hp, Wp, C = xp_nhwc.shape
    x2 = xp_nhwc.reshape(N, Hp, Wp * C)
    slabs = [x2[:, kh:kh + Ho, :] for kh in range(KH)]
    return jnp.concatenate(slabs, axis=-1).reshape(N * Ho, KH * Wp * C)


# ----------------------------------------------------------------------------
# Weight pre-packing (done once, outside the steady-state forward path).
# ----------------------------------------------------------------------------
def _flip_transpose(w_tr):
    """ConvTranspose2d weight [Cin,Cout,KH,KW] -> regular-conv [KH,KW,Cin,Cout]."""
    w = np.asarray(w_tr, np.float32)
    return np.transpose(w[:, :, ::-1, ::-1], (2, 3, 0, 1))


def _band_matrix(w_reg, Wp, Wo, KHv, kh_off=0, kw_off=0):
    """Banded (block-Toeplitz) weight:
    band[(kh+kh_off)*Wp*Ci + (wo+kw+kw_off)*Ci + ci, wo*Co + co] = w_reg[kh,kw,ci,co]."""
    KH, KW, Ci, Co = w_reg.shape
    band = np.zeros((KHv, Wp, Ci, Wo, Co), np.float32)
    for kh in range(KH):
        for kw in range(KW):
            for wo in range(Wo):
                band[kh + kh_off, wo + kw + kw_off, :, wo, :] += w_reg[kh, kw]
    return band.reshape(KHv * Wp * Ci, Wo * Co)


def _pad_cols(a, q_pad):
    return np.pad(a, ((0, 0), (0, q_pad - a.shape[1])))


def prepack_params(params, H, W):
    """Pre-build banded matmul weights / biases (depends only on weights and the
    static input spatial size), lane-padded to multiples of 128 columns."""
    Cin, Cout = params["w1"].shape[0], params["w1"].shape[1]
    upsample = Cin // Cout

    Hd, Wd = (H - 1) * upsample + 1, (W - 1) * upsample + 1
    Wp1 = Wd + 2                     # conv1 regular-conv pad = 3 - 1 - 1 = 1
    Ho, Wo = Hd, Wd
    Wp2 = Wo + 2                     # conv2: stride 1, pad 1
    Q = Wo * Cout
    Qp = _pad_to_lane(Q)

    w1 = _flip_transpose(params["w1"])                        # (3,3,Cin,Cout)
    w2 = _flip_transpose(params["w2"])                        # (3,3,Cout,Cout)
    b1 = np.asarray(params["b1"], np.float32)
    b2 = np.asarray(params["b2"], np.float32)

    band1 = _pad_cols(_band_matrix(w1, Wp1, Wo, KHv=3), Qp)   # (3*Wp1*Cin, Qp)
    bias1 = _pad_cols(np.tile(b1, Wo)[None, :], Qp)
    band2 = _pad_cols(_band_matrix(w2, Wp2, Wo, KHv=3), Qp)   # (3*Wp2*Cout, Qp)
    bias2 = _pad_cols(np.tile(b2, Wo)[None, :], Qp)

    packed = {"w2_band": jnp.asarray(band2, jnp.bfloat16),
              "b2": jnp.asarray(bias2, jnp.float32)}

    if upsample > 1:
        # Shortcut (1x1, stride=upsample, pad=0) reads xp[ho+1, wo+1] of the SAME
        # padded input conv1 uses -> fold it into the kh=1 slab with kw offset 1
        # and fuse it as the second half of the stage-1 weight / bias.
        ws = _flip_transpose(params["ws"])                    # (1,1,Cin,Cout)
        bs = np.asarray(params["bs"], np.float32)
        band_s = _pad_cols(_band_matrix(ws, Wp1, Wo, KHv=3, kh_off=1, kw_off=1),
                           Qp)
        bias_s = _pad_cols(np.tile(bs, Wo)[None, :], Qp)
        packed["w1s_band"] = jnp.asarray(
            np.concatenate([band1, band_s], axis=1), jnp.bfloat16)
        packed["b1s"] = jnp.asarray(
            np.concatenate([bias1, bias_s], axis=1), jnp.float32)
    else:
        packed["w1_band"] = jnp.asarray(band1, jnp.bfloat16)
        packed["b1"] = jnp.asarray(bias1, jnp.float32)
    return packed


# ----------------------------------------------------------------------------
# ResBlockTranspose forward (NCHW in / NCHW out, like the PyTorch module).
# ----------------------------------------------------------------------------
@functools.partial(jax.jit, static_argnames=("upsample",))
def res_block_transpose(x_nchw, packed, *, upsample):
    N, Cin, H, W = x_nchw.shape
    Cout = Cin // upsample
    x = jnp.transpose(x_nchw, (0, 2, 3, 1)).astype(jnp.bfloat16)   # NHWC bf16

    # --- stage-1 glue: dilate (stride>1) + pad + kh im2col --------------------
    if upsample > 1:
        Hd, Wd = (H - 1) * upsample + 1, (W - 1) * upsample + 1
        xd = jnp.zeros((N, Hd, Wd, Cin), jnp.bfloat16)
        xd = xd.at[:, ::upsample, ::upsample, :].set(x)
    else:
        Hd, Wd = H, W
        xd = x
    xp = jnp.pad(xd, ((0, 0), (1, 1), (1, 1), (0, 0)))
    Ho, Wo = Hd, Wd
    Q = Wo * Cout
    xk1 = _im2col_kh(xp, KH=3, Ho=Ho)                    # (N*Ho, 3*Wp1*Cin)

    # --- stage 1: conv1_tr (+ReLU), fused with shortcut_tr when upsample>1 ----
    if upsample > 1:
        out1, res = _run_dual_matmul(xk1, packed["w1s_band"], packed["b1s"],
                                     out_dtype=jnp.bfloat16)
    else:
        out1 = _run_matmul(xk1, packed["w1_band"], packed["b1"],
                           apply_relu=True, out_dtype=jnp.bfloat16)
        qp = out1.shape[1]
        res = jnp.zeros((N * Ho, qp), jnp.bfloat16)
        res = res.at[:, :Q].set(x.reshape(N * Ho, Q))    # identity residual

    # --- stage-2 glue: un-pad lanes, spatial pad, kh im2col --------------------
    y1 = out1[:, :Q].reshape(N, Ho, Wo, Cout)
    y1p = jnp.pad(y1, ((0, 0), (1, 1), (1, 1), (0, 0)))
    xk2 = _im2col_kh(y1p, KH=3, Ho=Ho)                   # (N*Ho, 3*Wp2*Cout)

    # --- stage 2: conv2_tr + residual add + ReLU (residual already lane-padded)
    out2 = _run_matmul(xk2, packed["w2_band"], packed["b2"],
                       residual=res, apply_relu=True, out_dtype=jnp.float32)
    y = out2[:, :Q].reshape(N, Ho, Wo, Cout)
    return jnp.transpose(y, (0, 3, 1, 2))                # -> NCHW


# ----------------------------------------------------------------------------
# Deterministic parameter init (PyTorch ConvTranspose2d default-style uniform).
# ----------------------------------------------------------------------------
def init_params(key, in_channels, out_channels):
    ks = jax.random.split(key, 6)

    def u(k, shape, fan_in):
        bound = 1.0 / np.sqrt(fan_in)
        return jax.random.uniform(k, shape, jnp.float32, -bound, bound)

    return {
        "w1": u(ks[0], (in_channels, out_channels, 3, 3), out_channels * 9),
        "b1": u(ks[1], (out_channels,), out_channels * 9),
        "w2": u(ks[2], (out_channels, out_channels, 3, 3), out_channels * 9),
        "b2": u(ks[3], (out_channels,), out_channels * 9),
        "ws": u(ks[4], (in_channels, out_channels, 1, 1), out_channels),
        "bs": u(ks[5], (out_channels,), out_channels),
    }


# ----------------------------------------------------------------------------
# Pure-XLA reference (independent of the Pallas kernels) for correctness check.
# ----------------------------------------------------------------------------
def _ref_conv_transpose(x, w_tr, b, stride, padding):
    Cin, Cout, KH, KW = w_tr.shape
    w_oihw = jnp.transpose(w_tr[:, :, ::-1, ::-1], (1, 0, 2, 3))
    out = lax.conv_general_dilated(
        x, w_oihw, window_strides=(1, 1),
        padding=[(KH - 1 - padding,) * 2, (KW - 1 - padding,) * 2],
        lhs_dilation=(stride, stride),
        dimension_numbers=("NCHW", "OIHW", "NCHW"))
    return out + b.reshape(1, Cout, 1, 1)


def ref_forward(x, params):
    in_channels = params["w1"].shape[0]
    out_channels = params["w1"].shape[1]
    upsample = in_channels // out_channels
    out = jax.nn.relu(_ref_conv_transpose(x, params["w1"], params["b1"],
                                          upsample, 1))
    out = _ref_conv_transpose(out, params["w2"], params["b2"], 1, 1)
    residual = x
    if upsample > 1:
        residual = _ref_conv_transpose(x, params["ws"], params["bs"],
                                       upsample, 0)
    return jax.nn.relu(out + residual)


if __name__ == "__main__":
    key = jax.random.PRNGKey(0)

    # Case 1: upsample = 2 (exercises the fused conv1 + shortcut path).
    in_channels, out_channels = 8, 4
    N, H, W = 2, 8, 8
    kx, kp = jax.random.split(key)
    x = jax.random.normal(kx, (N, in_channels, H, W), jnp.float32)
    params = init_params(kp, in_channels, out_channels)
    packed = prepack_params(params, H, W)

    y = jax.block_until_ready(
        res_block_transpose(x, packed, upsample=in_channels // out_channels))
    assert y.shape == (N, out_channels, 2 * H - 1, 2 * W - 1), y.shape
    y_ref = jax.block_until_ready(ref_forward(x, params))
    # bf16 matmul operands / bf16 intermediates (f32 accumulate) -> loose tol.
    np.testing.assert_allclose(np.asarray(y), np.asarray(y_ref),
                               rtol=5e-2, atol=5e-2)

    # Case 2: upsample = 1 (identity shortcut path).
    kx2, kp2 = jax.random.split(kp)
    x1 = jax.random.normal(kx2, (N, 4, H, W), jnp.float32)
    params1 = init_params(kp2, 4, 4)
    packed1 = prepack_params(params1, H, W)
    y1 = jax.block_until_ready(res_block_transpose(x1, packed1, upsample=1))
    y1_ref = jax.block_until_ready(ref_forward(x1, params1))
    assert y1.shape == y1_ref.shape, (y1.shape, y1_ref.shape)
    np.testing.assert_allclose(np.asarray(y1), np.asarray(y1_ref),
                               rtol=5e-2, atol=5e-2)

    print("KERNEL_OK")
</pallas_src>

<mosaic_0001>
module attributes {stable_mosaic.version = 11 : i64} {
  func.func @_dual_matmul_kernel(%arg0: i32, %arg1: memref<30x408xbf16, #tpu.memory_space<vmem>>, %arg2: memref<408x256xbf16, #tpu.memory_space<vmem>>, %arg3: memref<1x256xf32, #tpu.memory_space<vmem>>, %arg4: memref<30x128xbf16, #tpu.memory_space<vmem>>, %arg5: memref<30x128xbf16, #tpu.memory_space<vmem>>) attributes {dimension_semantics = [#tpu.dimension_semantics<arbitrary>], iteration_bounds = array<i64: 1>, scalar_prefetch = 0 : i64, scratch_operands = 0 : i64, tpu.core_type = #tpu.core_type<tc>, window_params = [{pipeline_mode = #tpu.pipeline_mode<synchronous>, transform_indices = @transform_0, window_bounds = array<i64: 30, 408>}, {pipeline_mode = #tpu.pipeline_mode<synchronous>, transform_indices = @transform_1, window_bounds = array<i64: 408, 256>}, {pipeline_mode = #tpu.pipeline_mode<synchronous>, transform_indices = @transform_2, window_bounds = array<i64: 1, 256>}, {pipeline_mode = #tpu.pipeline_mode<synchronous>, transform_indices = @transform_3, window_bounds = array<i64: 30, 128>}, {pipeline_mode = #tpu.pipeline_mode<synchronous>, transform_indices = @transform_4, window_bounds = array<i64: 30, 128>}]} {
    %c0 = arith.constant 0 : index
    %c0_0 = arith.constant 0 : index
    %0 = vector.load %arg1[%c0, %c0_0] : memref<30x408xbf16, #tpu.memory_space<vmem>>, vector<30x408xbf16>
    %c0_1 = arith.constant 0 : index
    %c0_2 = arith.constant 0 : index
    %1 = vector.load %arg2[%c0_1, %c0_2] : memref<408x256xbf16, #tpu.memory_space<vmem>>, vector<408x256xbf16>
    %cst = arith.constant dense<0.000000e+00> : vector<30x256xf32>
    %2 = tpu.matmul %0, %1, %cst {dimension_numbers = #tpu.dot_dimension_numbers<[1], [0], [0], [1], [0, 0, 1, 1], [], []>} : vector<30x408xbf16>, vector<408x256xbf16>, vector<30x256xf32> -> vector<30x256xf32>
    %c0_3 = arith.constant 0 : index
    %c0_4 = arith.constant 0 : index
    %3 = vector.load %arg3[%c0_3, %c0_4] : memref<1x256xf32, #tpu.memory_space<vmem>>, vector<1x256xf32>
    %4 = vector.broadcast %3 : vector<1x256xf32> to vector<30x256xf32>
    %5 = arith.addf %2, %4 : vector<30x256xf32>
    %6 = vector.extract_strided_slice %5 {offsets = [0, 0], sizes = [30, 128], strides = [1, 1]} : vector<30x256xf32> to vector<30x128xf32>
    %cst_5 = arith.constant 0.000000e+00 : f32
    %7 = vector.broadcast %cst_5 : f32 to vector<30x128xf32>
    %8 = arith.maximumf %6, %7 : vector<30x128xf32>
    %9 = arith.truncf %8 : vector<30x128xf32> to vector<30x128xbf16>
    %c0_6 = arith.constant 0 : index
    %c0_7 = arith.constant 0 : index
    %10 = vector.load %arg4[%c0_6, %c0_7] : memref<30x128xbf16, #tpu.memory_space<vmem>>, vector<30x128xbf16>
    tpu.vector_store %arg4[%c0_6, %c0_7], %9 {strides = array<i32>} : memref<30x128xbf16, #tpu.memory_space<vmem>>, vector<30x128xbf16>,
    %11 = vector.extract_strided_slice %5 {offsets = [0, 128], sizes = [30, 128], strides = [1, 1]} : vector<30x256xf32> to vector<30x128xf32>
    %12 = arith.truncf %11 : vector<30x128xf32> to vector<30x128xbf16>
    %c0_8 = arith.constant 0 : index
    %c0_9 = arith.constant 0 : index
    %13 = vector.load %arg5[%c0_8, %c0_9] : memref<30x128xbf16, #tpu.memory_space<vmem>>, vector<30x128xbf16>
    tpu.vector_store %arg5[%c0_8, %c0_9], %12 {strides = array<i32>} : memref<30x128xbf16, #tpu.memory_space<vmem>>, vector<30x128xbf16>,
    return
  }
  func.func @transform_0(%arg0: i32) -> (i32, i32) {
    %c0_i32 = arith.constant 0 : i32
    %c0_i32_0 = arith.constant 0 : i32
    %c0_i32_1 = arith.constant 0 : i32
    return %c0_i32, %c0_i32_0 : i32, i32
  }
  func.func @transform_1(%arg0: i32) -> (i32, i32) {
    %c0_i32 = arith.constant 0 : i32
    %c0_i32_0 = arith.constant 0 : i32
    %c0_i32_1 = arith.constant 0 : i32
    return %c0_i32, %c0_i32_0 : i32, i32
  }
  func.func @transform_2(%arg0: i32) -> (i32, i32) {
    %c0_i32 = arith.constant 0 : i32
    %c0_i32_0 = arith.constant 0 : i32
    %c0_i32_1 = arith.constant 0 : i32
    return %c0_i32, %c0_i32_0 : i32, i32
  }
  func.func @transform_3(%arg0: i32) -> (i32, i32) {
    %c0_i32 = arith.constant 0 : i32
    %c0_i32_0 = arith.constant 0 : i32
    %c0_i32_1 = arith.constant 0 : i32
    return %c0_i32, %c0_i32_0 : i32, i32
  }
  func.func @transform_4(%arg0: i32) -> (i32, i32) {
    %c0_i32 = arith.constant 0 : i32
    %c0_i32_0 = arith.constant 0 : i32
    %c0_i32_1 = arith.constant 0 : i32
    return %c0_i32, %c0_i32_0 : i32, i32
  }
}

module attributes {stable_mosaic.version = 11 : i64} {
  func.func @_matmul_epilogue_kernel(%arg0: i32, %arg1: memref<30x204xbf16, #tpu.memory_space<vmem>>, %arg2: memref<204x128xbf16, #tpu.memory_space<vmem>>, %arg3: memref<1x128xf32, #tpu.memory_space<vmem>>, %arg4: memref<30x128xbf16, #tpu.memory_space<vmem>>, %arg5: memref<30x128xf32, #tpu.memory_space<vmem>>) attributes {dimension_semantics = [#tpu.dimension_semantics<arbitrary>], iteration_bounds = array<i64: 1>, scalar_prefetch = 0 : i64, scratch_operands = 0 : i64, tpu.core_type = #tpu.core_type<tc>, window_params = [{pipeline_mode = #tpu.pipeline_mode<synchronous>, transform_indices = @transform_0, window_bounds = array<i64: 30, 204>}, {pipeline_mode = #tpu.pipeline_mode<synchronous>, transform_indices = @transform_1, window_bounds = array<i64: 204, 128>}, {pipeline_mode = #tpu.pipeline_mode<synchronous>, transform_indices = @transform_2, window_bounds = array<i64: 1, 128>}, {pipeline_mode = #tpu.pipeline_mode<synchronous>, transform_indices = @transform_3, window_bounds = array<i64: 30, 128>}, {pipeline_mode = #tpu.pipeline_mode<synchronous>, transform_indices = @transform_4, window_bounds = array<i64: 30, 128>}]} {
    %c0 = arith.constant 0 : index
    %c0_0 = arith.constant 0 : index
    %0 = vector.load %arg1[%c0, %c0_0] : memref<30x204xbf16, #tpu.memory_space<vmem>>, vector<30x204xbf16>
    %c0_1 = arith.constant 0 : index
    %c0_2 = arith.constant 0 : index
    %1 = vector.load %arg2[%c0_1, %c0_2] : memref<204x128xbf16, #tpu.memory_space<vmem>>, vector<204x128xbf16>
    %cst = arith.constant dense<0.000000e+00> : vector<30x128xf32>
    %2 = tpu.matmul %0, %1, %cst {dimension_numbers = #tpu.dot_dimension_numbers<[1], [0], [0], [1], [0, 0, 1, 1], [], []>} : vector<30x204xbf16>, vector<204x128xbf16>, vector<30x128xf32> -> vector<30x128xf32>
    %c0_3 = arith.constant 0 : index
    %c0_4 = arith.constant 0 : index
    %3 = vector.load %arg3[%c0_3, %c0_4] : memref<1x128xf32, #tpu.memory_space<vmem>>, vector<1x128xf32>
    %4 = vector.broadcast %3 : vector<1x128xf32> to vector<30x128xf32>
    %5 = arith.addf %2, %4 : vector<30x128xf32>
    %c0_5 = arith.constant 0 : index
    %c0_6 = arith.constant 0 : index
    %6 = vector.load %arg4[%c0_5, %c0_6] : memref<30x128xbf16, #tpu.memory_space<vmem>>, vector<30x128xbf16>
    %7 = arith.extf %6 : vector<30x128xbf16> to vector<30x128xf32>
    %8 = arith.addf %5, %7 : vector<30x128xf32>
    %cst_7 = arith.constant 0.000000e+00 : f32
    %9 = vector.broadcast %cst_7 : f32 to vector<30x128xf32>
    %10 = arith.maximumf %8, %9 : vector<30x128xf32>
    %c0_8 = arith.constant 0 : index
    %c0_9 = arith.constant 0 : index
    %11 = vector.load %arg5[%c0_8, %c0_9] : memref<30x128xf32, #tpu.memory_space<vmem>>, vector<30x128xf32>
    tpu.vector_store %arg5[%c0_8, %c0_9], %10 {strides = array<i32>} : memref<30x128xf32, #tpu.memory_space<vmem>>, vector<30x128xf32>,
    return
  }
  func.func @transform_0(%arg0: i32) -> (i32, i32) {
    %c0_i32 = arith.constant 0 : i32
    %c0_i32_0 = arith.constant 0 : i32
    %c0_i32_1 = arith.constant 0 : i32
    return %c0_i32, %c0_i32_0 : i32, i32
  }
  func.func @transform_1(%arg0: i32) -> (i32, i32) {
    %c0_i32 = arith.constant 0 : i32
    %c0_i32_0 = arith.constant 0 : i32
    %c0_i32_1 = arith.constant 0 : i32
    return %c0_i32, %c0_i32_0 : i32, i32
  }
  func.func @transform_2(%arg0: i32) -> (i32, i32) {
    %c0_i32 = arith.constant 0 : i32
    %c0_i32_0 = arith.constant 0 : i32
    %c0_i32_1 = arith.constant 0 : i32
    return %c0_i32, %c0_i32_0 : i32, i32
  }
  func.func @transform_3(%arg0: i32) -> (i32, i32) {
    %c0_i32 = arith.constant 0 : i32
    %c0_i32_0 = arith.constant 0 : i32
    %c0_i32_1 = arith.constant 0 : i32
    return %c0_i32, %c0_i32_0 : i32, i32
  }
  func.func @transform_4(%arg0: i32) -> (i32, i32) {
    %c0_i32 = arith.constant 0 : i32
    %c0_i32_0 = arith.constant 0 : i32
    %c0_i32_1 = arith.constant 0 : i32
    return %c0_i32, %c0_i32_0 : i32, i32
  }
}

</mosaic_0001>

<llo_original>
// kernel: res_block_transpose.2
$region0: #{res_block_transpose.2}
  #allocation0 [shape = 'u32[]', space=smem, size = 0x4, offset = 0x4, fixed_abs, tag = 'smem constant byte address 0x4 - core index']
  #allocation1 [shape = 'u32[144,128]{1,0:T(1,128)}', space=vmem, size = 0x12000, scoped, tag = 'internal scratch']
  %s0 = inlined_call_operand.vmem [shape: bf16[30,408], index: 0, kind: input, shape index: {}]
  %s1 = inlined_call_operand.vmem [shape: bf16[408,256], index: 1, kind: input, shape index: {}]
  %s2 = inlined_call_operand.vmem [shape: f32[1,256], index: 2, kind: input, shape index: {}]
  %s3 = inlined_call_operand.vmem [shape: bf16[30,128], index: 3, kind: output, shape index: {0}]
  %s4 = inlined_call_operand.vmem [shape: bf16[30,128], index: 4, kind: output, shape index: {1}]
  %5 = xla_tuple %s3, %s4
  %s6 = sld [smem:[#allocation0]]
  $region30: #{res_block_transpose.2} parent=0
    _
  %s8 = ssub.s32 1, %s6
  %s9 = scalar_select 0, %s8, %s6
  // Predicated region
  $region2: #{res_block_transpose.2} parent=0 // pred_check
    _
  $region3: #{res_block_transpose.2} parent=0 // pred_check_branch
    %11 = sbr.rel (0) target = $region5
  $region4: #{res_block_transpose.2} parent=0 // pred_region
    _
  $region5: #{res_block_transpose.2} parent=0 // pred_fallthru
    _
  // Predicated region
  $region6: #{res_block_transpose.2} parent=0 // pred_check
    _
  $region7: #{res_block_transpose.2} parent=0 // pred_check_branch
    %13 = sbr.rel (0) target = $region9
  $region8: #{res_block_transpose.2} parent=0 // pred_region
    _
  $region9: #{res_block_transpose.2} parent=0 // pred_fallthru
    _
  // Predicated region
  $region10: #{res_block_transpose.2} parent=0 // pred_check
    _
  $region11: #{res_block_transpose.2} parent=0 // pred_check_branch
    %15 = sbr.rel (0) target = $region13
  $region12: #{res_block_transpose.2} parent=0 // pred_region
    _
  $region13: #{res_block_transpose.2} parent=0 // pred_fallthru
    _
  %v17 = vld [vmem:[%s0] sm:$0xff]
  %v18 = vld [vmem:[%s0 + $0x8] sm:$0xff]
  %v19 = vld [vmem:[%s0 + $0x10] sm:$0xff]
  %v20 = vld [vmem:[%s0 + $0x18] sm:$0xff]
  %v21 = vld [vmem:[%s0 + $0x20] sm:$0xff]
  %v22 = vld [vmem:[%s0 + $0x28] sm:$0xff]
  %v23 = vld [vmem:[%s0 + $0x30] sm:$0x77]
  %v24 = vld [vmem:[%s0 + $0x38] sm:$0x77]
  %v25 = vld [vmem:[%s1] sm:$0xff]
  %v26 = vld [vmem:[%s1 + $0x8] sm:$0xff]
  %v27 = vld [vmem:[%s1 + $0x10] sm:$0xff]
  %v28 = vld [vmem:[%s1 + $0x18] sm:$0xff]
  %v29 = vld [vmem:[%s1 + $0x20] sm:$0xff]
  %v30 = vld [vmem:[%s1 + $0x28] sm:$0xff]
  %v31 = vld [vmem:[%s1 + $0x30] sm:$0xff]
  %v32 = vld [vmem:[%s1 + $0x38] sm:$0xff]
  %v33 = vld [vmem:[%s1 + $0x40] sm:$0xff]
  %v34 = vld [vmem:[%s1 + $0x48] sm:$0xff]
  %v35 = vld [vmem:[%s1 + $0x50] sm:$0xff]
  %v36 = vld [vmem:[%s1 + $0x58] sm:$0xff]
  %v37 = vld [vmem:[%s1 + $0x60] sm:$0xff]
  %v38 = vld [vmem:[%s1 + $0x68] sm:$0xff]
  %v39 = vld [vmem:[%s1 + $0x70] sm:$0xff]
  %v40 = vld [vmem:[%s1 + $0x78] sm:$0xff]
  %v41 = vld [vmem:[%s1 + $0x80] sm:$0xff]
  %v42 = vld [vmem:[%s1 + $0x88] sm:$0xff]
  %v43 = vld [vmem:[%s1 + $0x90] sm:$0xff]
  %v44 = vld [vmem:[%s1 + $0x98] sm:$0xff]
  %v45 = vld [vmem:[%s1 + $0xa0] sm:$0xff]
  %v46 = vld [vmem:[%s1 + $0xa8] sm:$0xff]
  %v47 = vld [vmem:[%s1 + $0xb0] sm:$0xff]
  %v48 = vld [vmem:[%s1 + $0xb8] sm:$0xff]
  %v49 = vld [vmem:[%s1 + $0xc0] sm:$0xff]
  %v50 = vld [vmem:[%s1 + $0xc8] sm:$0xff]
  %v51 = vld [vmem:[%s1 + $0xd0] sm:$0xff]
  %v52 = vld [vmem:[%s1 + $0xd8] sm:$0xff]
  %v53 = vld [vmem:[%s1 + $0xe0] sm:$0xff]
  %v54 = vld [vmem:[%s1 + $0xe8] sm:$0xff]
  %v55 = vld [vmem:[%s1 + $0xf0] sm:$0xff]
  %v56 = vld [vmem:[%s1 + $0xf8] sm:$0xff]
  %v57 = vld [vmem:[%s1 + $0x100] sm:$0xff]
  %v58 = vld [vmem:[%s1 + $0x108] sm:$0xff]
  %v59 = vld [vmem:[%s1 + $0x110] sm:$0xff]
  %v60 = vld [vmem:[%s1 + $0x118] sm:$0xff]
  %v61 = vld [vmem:[%s1 + $0x120] sm:$0xff]
  %v62 = vld [vmem:[%s1 + $0x128] sm:$0xff]
  %v63 = vld [vmem:[%s1 + $0x130] sm:$0xff]
  %v64 = vld [vmem:[%s1 + $0x138] sm:$0xff]
  %v65 = vld [vmem:[%s1 + $0x140] sm:$0xff]
  %v66 = vld [vmem:[%s1 + $0x148] sm:$0xff]
  %v67 = vld [vmem:[%s1 + $0x150] sm:$0xff]
  %v68 = vld [vmem:[%s1 + $0x158] sm:$0xff]
  %v69 = vld [vmem:[%s1 + $0x160] sm:$0xff]
  %v70 = vld [vmem:[%s1 + $0x168] sm:$0xff]
  %v71 = vld [vmem:[%s1 + $0x170] sm:$0xff]
  %v72 = vld [vmem:[%s1 + $0x178] sm:$0xff]
  %v73 = vld [vmem:[%s1 + $0x180] sm:$0xff]
  %v74 = vld [vmem:[%s1 + $0x188] sm:$0xff]
  %v75 = vld [vmem:[%s1 + $0x190] sm:$0xff]
  %v76 = vld [vmem:[%s2] sm:$0x3]
  %v78 = vlaneseq
  %v79 = vshrl.u32 %v78, 7
  %v80 = vsub.s32 0, %v79
  %v81 = vrot.slane %v76, %v80
  %v82 = vlaneseq
  %v83 = vshrl.u32 %v82, 7
  %v84 = vsub.s32 1, %v83
  %v85 = vrot.slane %v76, %v84
  %v96 = vunpack.c.l.b16 %v17
  %v97 = vunpack.c.h.b16 %v17
  %v98 = vunpack.c.l.b16 %v18
  %v99 = vunpack.c.h.b16 %v18
  %v100 = vunpack.c.l.b16 %v19
  %v101 = vunpack.c.h.b16 %v19
  %v102 = vunpack.c.l.b16 %v20
  %v103 = vunpack.c.h.b16 %v20
  %v104 = vunpack.c.l.b16 %v21
  %v105 = vunpack.c.h.b16 %v21
  %v106 = vunpack.c.l.b16 %v22
  %v107 = vunpack.c.h.b16 %v22
  %v108 = vunpack.c.l.b16 %v23
  %v109 = vunpack.c.h.b16 %v23
  %v110 = vunpack.c.l.b16 %v24
  %v111 = vunpack.c.h.b16 %v24
  %v112 = vpack.c.b16 %v100, %v96
  %v113 = vpack.c.b16 %v101, %v97
  %v114 = vpack.c.b16 %v102, %v98
  %v115 = vpack.c.b16 %v103, %v99
  %v116 = vpack.c.b16 %v108, %v104
  %v117 = vpack.c.b16 %v109, %v105
  %v118 = vpack.c.b16 %v110, %v106
  %v119 = vpack.c.b16 %v111, %v107
  %v177 = vunpack.c.l.b16 %v25
  %v178 = vunpack.c.h.b16 %v25
  %v179 = vunpack.c.l.b16 %v26
  %v180 = vunpack.c.h.b16 %v26
  %v181 = vunpack.c.l.b16 %v27
  %v182 = vunpack.c.h.b16 %v27
  %v183 = vunpack.c.l.b16 %v28
  %v184 = vunpack.c.h.b16 %v28
  %v185 = vunpack.c.l.b16 %v29
  %v186 = vunpack.c.h.b16 %v29
  %v187 = vunpack.c.l.b16 %v30
  %v188 = vunpack.c.h.b16 %v30
  %v189 = vunpack.c.l.b16 %v31
  %v190 = vunpack.c.h.b16 %v31
  %v191 = vunpack.c.l.b16 %v32
  %v192 = vunpack.c.h.b16 %v32
  %v193 = vunpack.c.l.b16 %v33
  %v194 = vunpack.c.h.b16 %v33
  %v195 = vunpack.c.l.b16 %v34
  %v196 = vunpack.c.h.b16 %v34
  %v197 = vunpack.c.l.b16 %v35
  %v198 = vunpack.c.h.b16 %v35
  %v199 = vunpack.c.l.b16 %v36
  %v200 = vunpack.c.h.b16 %v36
  %v201 = vunpack.c.l.b16 %v37
  %v202 = vunpack.c.h.b16 %v37
  %v203 = vunpack.c.l.b16 %v38
  %v204 = vunpack.c.h.b16 %v38
  %v205 = vunpack.c.l.b16 %v39
  %v206 = vunpack.c.h.b16 %v39
  %v207 = vunpack.c.l.b16 %v40
  %v208 = vunpack.c.h.b16 %v40
  %v209 = vunpack.c.l.b16 %v41
  %v210 = vunpack.c.h.b16 %v41
  %v211 = vunpack.c.l.b16 %v42
  %v212 = vunpack.c.h.b16 %v42
  %v213 = vunpack.c.l.b16 %v43
  %v214 = vunpack.c.h.b16 %v43
  %v215 = vunpack.c.l.b16 %v44
  %v216 = vunpack.c.h.b16 %v44
  %v217 = vunpack.c.l.b16 %v45
  %v218 = vunpack.c.h.b16 %v45
  %v219 = vunpack.c.l.b16 %v46
  %v220 = vunpack.c.h.b16 %v46
  %v221 = vunpack.c.l.b16 %v47
  %v222 = vunpack.c.h.b16 %v47
  %v223 = vunpack.c.l.b16 %v48
  %v224 = vunpack.c.h.b16 %v48
  %v225 = vunpack.c.l.b16 %v49
  %v226 = vunpack.c.h.b16 %v49
  %v227 = vunpack.c.l.b16 %v50
  %v228 = vunpack.c.h.b16 %v50
  %v229 = vunpack.c.l.b16 %v51
  %v230 = vunpack.c.h.b16 %v51
  %v231 = vunpack.c.l.b16 %v52
  %v232 = vunpack.c.h.b16 %v52
  %v233 = vunpack.c.l.b16 %v53
  %v234 = vunpack.c.h.b16 %v53
  %v235 = vunpack.c.l.b16 %v54
  %v236 = vunpack.c.h.b16 %v54
  %v237 = vunpack.c.l.b16 %v55
  %v238 = vunpack.c.h.b16 %v55
  %v239 = vunpack.c.l.b16 %v56
  %v240 = vunpack.c.h.b16 %v56
  %v241 = vunpack.c.l.b16 %v57
  %v242 = vunpack.c.h.b16 %v57
  %v243 = vunpack.c.l.b16 %v58
  %v244 = vunpack.c.h.b16 %v58
  %v245 = vunpack.c.l.b16 %v59
  %v246 = vunpack.c.h.b16 %v59
  %v247 = vunpack.c.l.b16 %v60
  %v248 = vunpack.c.h.b16 %v60
  %v249 = vunpack.c.l.b16 %v61
  %v250 = vunpack.c.h.b16 %v61
  %v251 = vunpack.c.l.b16 %v62
  %v252 = vunpack.c.h.b16 %v62
  %v253 = vunpack.c.l.b16 %v63
  %v254 = vunpack.c.h.b16 %v63
  %v255 = vunpack.c.l.b16 %v64
  %v256 = vunpack.c.h.b16 %v64
  %v257 = vunpack.c.l.b16 %v65
  %v258 = vunpack.c.h.b16 %v65
  %v259 = vunpack.c.l.b16 %v66
  %v260 = vunpack.c.h.b16 %v66
  %v261 = vunpack.c.l.b16 %v67
  %v262 = vunpack.c.h.b16 %v67
  %v263 = vunpack.c.l.b16 %v68
  %v264 = vunpack.c.h.b16 %v68
  %v265 = vunpack.c.l.b16 %v69
  %v266 = vunpack.c.h.b16 %v69
  %v267 = vunpack.c.l.b16 %v70
  %v268 = vunpack.c.h.b16 %v70
  %v269 = vunpack.c.l.b16 %v71
  %v270 = vunpack.c.h.b16 %v71
  %v271 = vunpack.c.l.b16 %v72
  %v272 = vunpack.c.h.b16 %v72
  %v273 = vunpack.c.l.b16 %v73
  %v274 = vunpack.c.h.b16 %v73
  %v275 = vunpack.c.l.b16 %v74
  %v276 = vunpack.c.h.b16 %v74
  %v277 = vunpack.c.l.b16 %v75
  %v278 = vunpack.c.h.b16 %v75
  %v279 = vpack.c.b16 %v179, %v177
  %v280 = vpack.c.b16 %v180, %v178
  %v281 = vpack.c.b16 %v183, %v181
  %v282 = vpack.c.b16 %v184, %v182
  %v283 = vpack.c.b16 %v187, %v185
  %v284 = vpack.c.b16 %v188, %v186
  %v285 = vpack.c.b16 %v191, %v189
  %v286 = vpack.c.b16 %v192, %v190
  %v287 = vpack.c.b16 %v195, %v193
  %v288 = vpack.c.b16 %v196, %v194
  %v289 = vpack.c.b16 %v199, %v197
  %v290 = vpack.c.b16 %v200, %v198
  %v291 = vpack.c.b16 %v203, %v201
  %v292 = vpack.c.b16 %v204, %v202
  %v293 = vpack.c.b16 %v207, %v205
  %v294 = vpack.c.b16 %v208, %v206
  %v295 = vpack.c.b16 %v211, %v209
  %v296 = vpack.c.b16 %v212, %v210
  %v297 = vpack.c.b16 %v215, %v213
  %v298 = vpack.c.b16 %v216, %v214
  %v299 = vpack.c.b16 %v219, %v217
  %v300 = vpack.c.b16 %v220, %v218
  %v301 = vpack.c.b16 %v223, %v221
  %v302 = vpack.c.b16 %v224, %v222
  %v303 = vpack.c.b16 %v227, %v225
  %v304 = vpack.c.b16 %v228, %v226
  %v305 = vpack.c.b16 %v231, %v229
  %v306 = vpack.c.b16 %v232, %v230
  %v307 = vpack.c.b16 %v235, %v233
  %v308 = vpack.c.b16 %v236, %v234
  %v309 = vpack.c.b16 %v239, %v237
  %v310 = vpack.c.b16 %v240, %v238
  %v311 = vpack.c.b16 %v243, %v241
  %v312 = vpack.c.b16 %v244, %v242
  %v313 = vpack.c.b16 %v247, %v245
  %v314 = vpack.c.b16 %v248, %v246
  %v315 = vpack.c.b16 %v251, %v249
  %v316 = vpack.c.b16 %v252, %v250
  %v317 = vpack.c.b16 %v255, %v253
  %v318 = vpack.c.b16 %v256, %v254
  %v319 = vpack.c.b16 %v259, %v257
  %v320 = vpack.c.b16 %v260, %v258
  %v321 = vpack.c.b16 %v263, %v261
  %v322 = vpack.c.b16 %v264, %v262
  %v323 = vpack.c.b16 %v267, %v265
  %v324 = vpack.c.b16 %v268, %v266
  %v325 = vpack.c.b16 %v271, %v269
  %v326 = vpack.c.b16 %v272, %v270
  %v327 = vpack.c.b16 %v275, %v273
  %v328 = vpack.c.b16 %v276, %v274
  %v329 = vpack.c.b16 %v277, %v277
  %v330 = vpack.c.b16 %v278, %v278
  %vm381 = vcmask 195584
  %v383 = vsel %vm381, %v115, 0
  %v386 = vsel %vm381, %v119, 0
  %vm388 = vcmask 1043456
  %v390 = vsel %vm388, %v329, 0
  %v393 = vsel %vm388, %v330, 0
  %395 = vmatprep.subr.bf16.mxu0 %v294
  %396 = vmatpush1.bf16.msra.mxu0 %v293
  %397 = vmatprep.subr.bf16.mxu0 %v292
  %398 = vmatpush1.bf16.msra.mxu0 %v291
  %399 = vmatprep.subr.bf16.mxu0 %v290
  %400 = vmatpush1.bf16.msra.mxu0 %v289
  %401 = vmatprep.subr.bf16.mxu0 %v288
  %402 = vmatpush1.bf16.msra.mxu0 %v287
  %403 = vmatprep.subr.bf16.mxu0 %v286
  %404 = vmatpush1.bf16.msra.mxu0 %v285
  %405 = vmatprep.subr.bf16.mxu0 %v284
  %406 = vmatpush1.bf16.msra.mxu0 %v283
  %407 = vmatprep.subr.bf16.mxu0 %v282
  %408 = vmatpush1.bf16.msra.mxu0 %v281
  %409 = vmatprep.subr.bf16.mxu0 %v280
  %410 = vmatpush1.bf16.msra.mxu0 %v279
  %411 = vmatprep.subr.bf16.mxu0 %v310
  %412 = vmatpush2.bf16.msra.mxu0 %v309
  %413 = vmatprep.subr.bf16.mxu0 %v308
  %414 = vmatpush2.bf16.msra.mxu0 %v307
  %415 = vmatprep.subr.bf16.mxu0 %v306
  %416 = vmatpush2.bf16.msra.mxu0 %v305
  %417 = vmatprep.subr.bf16.mxu0 %v304
  %418 = vmatpush2.bf16.msra.mxu0 %v303
  %419 = vmatprep.subr.bf16.mxu0 %v302
  %420 = vmatpush2.bf16.msra.mxu0 %v301
  %421 = vmatprep.subr.bf16.mxu0 %v300
  %422 = vmatpush2.bf16.msra.mxu0 %v299
  %423 = vmatprep.subr.bf16.mxu0 %v298
  %424 = vmatpush2.bf16.msra.mxu0 %v297
  %425 = vmatprep.subr.bf16.mxu0 %v296
  %426 = vmatpush2.bf16.msra.mxu0 %v295
  %427 = vmatprep.mubr.bf16.mxu0 %v113
  %428 = vmatmul.mubr.bf16.gmra.mxu0 %v112
  %v429 = vpop.f32.mrf.mxu0
  %v430 = vadd.f32 %v81, %v429
  %v431 = vpop.f32.mrf.mxu0
  %v432 = vadd.f32 %v85, %v431
  %v433 = vpop.f32.mrf.mxu0
  %v434 = vadd.f32 %v81, %v433
  %v435 = vpop.f32.mrf.mxu0
  %v436 = vadd.f32 %v85, %v435
  %437 = vmatprep.mubr.bf16.mxu0 %v117
  %438 = vmatmul.mubr.bf16.gmra.mxu0 %v116
  %v439 = vpop.f32.mrf.mxu0
  %v440 = vadd.f32 %v81, %v439
  %v441 = vpop.f32.mrf.mxu0
  %v442 = vadd.f32 %v85, %v441
  %v443 = vpop.f32.mrf.mxu0
  %v444 = vadd.f32 %v81, %v443
  %v445 = vpop.f32.mrf.mxu0
  %v446 = vadd.f32 %v85, %v445
  %447 = vdwg.mxu0
  %448 = vmatprep.subr.bf16.mxu0 %v326
  %449 = vmatpush1.bf16.msra.mxu0 %v325
  %450 = vmatprep.subr.bf16.mxu0 %v324
  %451 = vmatpush1.bf16.msra.mxu0 %v323
  %452 = vmatprep.subr.bf16.mxu0 %v322
  %453 = vmatpush1.bf16.msra.mxu0 %v321
  %454 = vmatprep.subr.bf16.mxu0 %v320
  %455 = vmatpush1.bf16.msra.mxu0 %v319
  %456 = vmatprep.subr.bf16.mxu0 %v318
  %457 = vmatpush1.bf16.msra.mxu0 %v317
  %458 = vmatprep.subr.bf16.mxu0 %v316
  %459 = vmatpush1.bf16.msra.mxu0 %v315
  %460 = vmatprep.subr.bf16.mxu0 %v314
  %461 = vmatpush1.bf16.msra.mxu0 %v313
  %462 = vmatprep.subr.bf16.mxu0 %v312
  %463 = vmatpush1.bf16.msra.mxu0 %v311
  %464 = vmatprep.subr.bf16.mxu0 0
  %465 = vmatpush2.bf16.msra.mxu0 0
  %466 = vmatprep.subr.bf16.mxu0 0
  %467 = vmatpush2.bf16.msra.mxu0 0
  %468 = vmatprep.subr.bf16.mxu0 0
  %469 = vmatpush2.bf16.msra.mxu0 0
  %470 = vmatprep.subr.bf16.mxu0 0
  %471 = vmatpush2.bf16.msra.mxu0 0
  %472 = vmatprep.subr.bf16.mxu0 0
  %473 = vmatpush2.bf16.msra.mxu0 0
  %474 = vmatprep.subr.bf16.mxu0 0
  %475 = vmatpush2.bf16.msra.mxu0 0
  %476 = vmatprep.subr.bf16.mxu0 %v393
  %477 = vmatpush2.bf16.msra.mxu0 %v390
  %478 = vmatprep.subr.bf16.mxu0 %v328
  %479 = vmatpush2.bf16.msra.mxu0 %v327
  %480 = vmatprep.mubr.bf16.mxu0 %v383
  %481 = vmatmul.mubr.bf16.gmra.mxu0 %v114
  %v482 = vpop.f32.mrf.mxu0
  %v483 = vadd.f32 %v430, %v482
  %v484 = vpop.f32.mrf.mxu0
  %v485 = vadd.f32 %v432, %v484
  %v486 = vpop.f32.mrf.mxu0
  %v487 = vadd.f32 %v434, %v486
  %v488 = vpop.f32.mrf.mxu0
  %v489 = vadd.f32 %v436, %v488
  %490 = vmatprep.mubr.bf16.mxu0 %v386
  %491 = vmatmul.mubr.bf16.gmra.mxu0 %v118
  %v492 = vpop.f32.mrf.mxu0
  %v493 = vadd.f32 %v440, %v492
  %v494 = vpop.f32.mrf.mxu0
  %v495 = vadd.f32 %v442, %v494
  %v496 = vpop.f32.mrf.mxu0
  %v497 = vadd.f32 %v444, %v496
  %v498 = vpop.f32.mrf.mxu0
  %v499 = vadd.f32 %v446, %v498
  %500 = vdwg.mxu0
  %v501 = vmax.f32 %v483, 0.0
  %v502 = vmax.f32 %v487, 0.0
  %v503 = vmax.f32 %v493, 0.0
  %v504 = vmax.f32 %v497, 0.0
  %v505 = vpack.c.bf16 %v502, %v501
  %v506 = vpack.c.bf16 %v504, %v503
  %v509 = vunpack.c.l.b16 %v505
  %v510 = vunpack.c.h.b16 %v505
  %v511 = vunpack.c.l.b16 %v506
  %v512 = vunpack.c.h.b16 %v506
  %v513 = vpack.c.b16 %v509, %v509
  %v514 = vpack.c.b16 %v510, %v510
  %v515 = vpack.c.b16 %v511, %v511
  %v516 = vpack.c.b16 %v512, %v512
  %521 = vst [vmem:[%s3] sm:$0xf] %v513
  %522 = vst [vmem:[%s3 + $0x4] sm:$0xf] %v514
  %523 = vst [vmem:[%s3 + $0x8] sm:$0xf] %v515
  %524 = vst [vmem:[%s3 + $0xc] sm:$0x7] %v516
  %v525 = vpack.c.bf16 %v489, %v485
  %v526 = vpack.c.bf16 %v499, %v495
  %v529 = vunpack.c.l.b16 %v525
  %v530 = vunpack.c.h.b16 %v525
  %v531 = vunpack.c.l.b16 %v526
  %v532 = vunpack.c.h.b16 %v526
  %v533 = vpack.c.b16 %v529, %v529
  %v534 = vpack.c.b16 %v530, %v530
  %v535 = vpack.c.b16 %v531, %v531
  %v536 = vpack.c.b16 %v532, %v532
  %541 = vst [vmem:[%s4] sm:$0xf] %v533
  %542 = vst [vmem:[%s4 + $0x4] sm:$0xf] %v534
  %543 = vst [vmem:[%s4 + $0x8] sm:$0xf] %v535
  %544 = vst [vmem:[%s4 + $0xc] sm:$0x7] %v536
  // Predicated region
  $region14: #{res_block_transpose.2} parent=0 // pred_check
    _
  $region15: #{res_block_transpose.2} parent=0 // pred_check_branch
    %546 = sbr.rel (0) target = $region17
  $region16: #{res_block_transpose.2} parent=0 // pred_region
    _
  $region17: #{res_block_transpose.2} parent=0 // pred_fallthru
    _
  // Predicated region
  $region18: #{res_block_transpose.2} parent=0 // pred_check
    _
  $region19: #{res_block_transpose.2} parent=0 // pred_check_branch
    %548 = sbr.rel (0) target = $region21
  $region20: #{res_block_transpose.2} parent=0 // pred_region
    _
  $region21: #{res_block_transpose.2} parent=0 // pred_fallthru
    _
  // Predicated region
  $region22: #{res_block_transpose.2} parent=0 // pred_check
    _
  $region23: #{res_block_transpose.2} parent=0 // pred_check_branch
    %550 = sbr.rel (0) target = $region25
  $region24: #{res_block_transpose.2} parent=0 // pred_region
    _
  $region25: #{res_block_transpose.2} parent=0 // pred_fallthru
    _
  // Predicated region
  $region26: #{res_block_transpose.2} parent=0 // pred_check
    _
  $region27: #{res_block_transpose.2} parent=0 // pred_check_branch
    %552 = sbr.rel (0) target = $region29
  $region28: #{res_block_transpose.2} parent=0 // pred_region
    _
  $region29: #{res_block_transpose.2} parent=0 // pred_fallthru
    _

// kernel: res_block_transpose.3
$region0: #{res_block_transpose.3}
  #allocation0 [shape = 'u32[]', space=smem, size = 0x4, offset = 0x4, fixed_abs, tag = 'smem constant byte address 0x4 - core index']
  #allocation1 [shape = 'u32[144,128]{1,0:T(1,128)}', space=vmem, size = 0x12000, scoped, tag = 'internal scratch']
  %s0 = inlined_call_operand.vmem [shape: bf16[30,204], index: 0, kind: input, shape index: {}]
  %s1 = inlined_call_operand.vmem [shape: bf16[204,128], index: 1, kind: input, shape index: {}]
  %s2 = inlined_call_operand.vmem [shape: f32[1,128], index: 2, kind: input, shape index: {}]
  %s3 = inlined_call_operand.vmem [shape: bf16[30,128], index: 3, kind: input, shape index: {}]
  %s4 = inlined_call_operand.vmem [shape: f32[30,128], index: 4, kind: output, shape index: {}]
  %s5 = sld [smem:[#allocation0]]
  $region26: #{res_block_transpose.3} parent=0
    _
  %s7 = ssub.s32 1, %s5
  %s8 = scalar_select 0, %s7, %s5
  // Predicated region
  $region2: #{res_block_transpose.3} parent=0 // pred_check
    _
  $region3: #{res_block_transpose.3} parent=0 // pred_check_branch
    %10 = sbr.rel (0) target = $region5
  $region4: #{res_block_transpose.3} parent=0 // pred_region
    _
  $region5: #{res_block_transpose.3} parent=0 // pred_fallthru
    _
  // Predicated region
  $region6: #{res_block_transpose.3} parent=0 // pred_check
    _
  $region7: #{res_block_transpose.3} parent=0 // pred_check_branch
    %12 = sbr.rel (0) target = $region9
  $region8: #{res_block_transpose.3} parent=0 // pred_region
    _
  $region9: #{res_block_transpose.3} parent=0 // pred_fallthru
    _
  // Predicated region
  $region10: #{res_block_transpose.3} parent=0 // pred_check
    _
  $region11: #{res_block_transpose.3} parent=0 // pred_check_branch
    %14 = sbr.rel (0) target = $region13
  $region12: #{res_block_transpose.3} parent=0 // pred_region
    _
  $region13: #{res_block_transpose.3} parent=0 // pred_fallthru
    _
  // Predicated region
  $region14: #{res_block_transpose.3} parent=0 // pred_check
    _
  $region15: #{res_block_transpose.3} parent=0 // pred_check_branch
    %16 = sbr.rel (0) target = $region17
  $region16: #{res_block_transpose.3} parent=0 // pred_region
    _
  $region17: #{res_block_transpose.3} parent=0 // pred_fallthru
    _
  %v18 = vld [vmem:[%s0] sm:$0xff]
  %v19 = vld [vmem:[%s0 + $0x8] sm:$0xff]
  %v20 = vld [vmem:[%s0 + $0x10] sm:$0xff]
  %v21 = vld [vmem:[%s0 + $0x18] sm:$0x77]
  %v22 = vld [vmem:[%s1] sm:$0xf]
  %v23 = vld [vmem:[%s1 + $0x4] sm:$0xf]
  %v24 = vld [vmem:[%s1 + $0x8] sm:$0xf]
  %v25 = vld [vmem:[%s1 + $0xc] sm:$0xf]
  %v26 = vld [vmem:[%s1 + $0x10] sm:$0xf]
  %v27 = vld [vmem:[%s1 + $0x14] sm:$0xf]
  %v28 = vld [vmem:[%s1 + $0x18] sm:$0xf]
  %v29 = vld [vmem:[%s1 + $0x1c] sm:$0xf]
  %v30 = vld [vmem:[%s1 + $0x20] sm:$0xf]
  %v31 = vld [vmem:[%s1 + $0x24] sm:$0xf]
  %v32 = vld [vmem:[%s1 + $0x28] sm:$0xf]
  %v33 = vld [vmem:[%s1 + $0x2c] sm:$0xf]
  %v34 = vld [vmem:[%s1 + $0x30] sm:$0xf]
  %v35 = vld [vmem:[%s1 + $0x34] sm:$0xf]
  %v36 = vld [vmem:[%s1 + $0x38] sm:$0xf]
  %v37 = vld [vmem:[%s1 + $0x3c] sm:$0xf]
  %v38 = vld [vmem:[%s1 + $0x40] sm:$0xf]
  %v39 = vld [vmem:[%s1 + $0x44] sm:$0xf]
  %v40 = vld [vmem:[%s1 + $0x48] sm:$0xf]
  %v41 = vld [vmem:[%s1 + $0x4c] sm:$0xf]
  %v42 = vld [vmem:[%s1 + $0x50] sm:$0xf]
  %v43 = vld [vmem:[%s1 + $0x54] sm:$0xf]
  %v44 = vld [vmem:[%s1 + $0x58] sm:$0xf]
  %v45 = vld [vmem:[%s1 + $0x5c] sm:$0xf]
  %v46 = vld [vmem:[%s1 + $0x60] sm:$0xf]
  %v47 = vld [vmem:[%s1 + $0x64] sm:$0x3]
  %v48 = vld [vmem:[%s2] sm:$0x1]
  %v50 = vlaneseq
  %v51 = vshrl.u32 %v50, 7
  %v52 = vsub.s32 0, %v51
  %v53 = vrot.slane %v48, %v52
  %v59 = vunpack.c.l.b16 %v18
  %v60 = vunpack.c.h.b16 %v18
  %v61 = vunpack.c.l.b16 %v19
  %v62 = vunpack.c.h.b16 %v19
  %v63 = vunpack.c.l.b16 %v20
  %v64 = vunpack.c.h.b16 %v20
  %v65 = vunpack.c.l.b16 %v21
  %v66 = vunpack.c.h.b16 %v21
  %v67 = vpack.c.b16 %v61, %v59
  %v68 = vpack.c.b16 %v62, %v60
  %v69 = vpack.c.b16 %v65, %v63
  %v70 = vpack.c.b16 %v66, %v64
  %v99 = vunpack.c.l.b16 %v22
  %v100 = vunpack.c.l.b16 %v23
  %v101 = vunpack.c.l.b16 %v24
  %v102 = vunpack.c.l.b16 %v25
  %v103 = vunpack.c.l.b16 %v26
  %v104 = vunpack.c.l.b16 %v27
  %v105 = vunpack.c.l.b16 %v28
  %v106 = vunpack.c.l.b16 %v29
  %v107 = vunpack.c.l.b16 %v30
  %v108 = vunpack.c.l.b16 %v31
  %v109 = vunpack.c.l.b16 %v32
  %v110 = vunpack.c.l.b16 %v33
  %v111 = vunpack.c.l.b16 %v34
  %v112 = vunpack.c.l.b16 %v35
  %v113 = vunpack.c.l.b16 %v36
  %v114 = vunpack.c.l.b16 %v37
  %v115 = vunpack.c.l.b16 %v38
  %v116 = vunpack.c.l.b16 %v39
  %v117 = vunpack.c.l.b16 %v40
  %v118 = vunpack.c.l.b16 %v41
  %v119 = vunpack.c.l.b16 %v42
  %v120 = vunpack.c.l.b16 %v43
  %v121 = vunpack.c.l.b16 %v44
  %v122 = vunpack.c.l.b16 %v45
  %v123 = vunpack.c.l.b16 %v46
  %v124 = vunpack.c.l.b16 %v47
  %v125 = vpack.c.b16 %v100, %v99
  %v126 = vpack.c.b16 %v102, %v101
  %v127 = vpack.c.b16 %v104, %v103
  %v128 = vpack.c.b16 %v106, %v105
  %v129 = vpack.c.b16 %v108, %v107
  %v130 = vpack.c.b16 %v110, %v109
  %v131 = vpack.c.b16 %v112, %v111
  %v132 = vpack.c.b16 %v114, %v113
  %v133 = vpack.c.b16 %v116, %v115
  %v134 = vpack.c.b16 %v118, %v117
  %v135 = vpack.c.b16 %v120, %v119
  %v136 = vpack.c.b16 %v122, %v121
  %v137 = vpack.c.b16 %v124, %v123
  %vm150 = vcmask 621568
  %v152 = vsel %vm150, %v68, 0
  %v155 = vsel %vm150, %v70, 0
  %vm157 = vcmask 1045504
  %v159 = vsel %vm157, %v137, 0
  %161 = vmatprep.subr.bf16.mxu0 0
  %162 = vmatpush1.bf16.msra.mxu0 %v132
  %163 = vmatprep.subr.bf16.mxu0 0
  %164 = vmatpush1.bf16.msra.mxu0 %v131
  %165 = vmatprep.subr.bf16.mxu0 0
  %166 = vmatpush1.bf16.msra.mxu0 %v130
  %167 = vmatprep.subr.bf16.mxu0 0
  %168 = vmatpush1.bf16.msra.mxu0 %v129
  %169 = vmatprep.subr.bf16.mxu0 0
  %170 = vmatpush1.bf16.msra.mxu0 %v128
  %171 = vmatprep.subr.bf16.mxu0 0
  %172 = vmatpush1.bf16.msra.mxu0 %v127
  %173 = vmatprep.subr.bf16.mxu0 0
  %174 = vmatpush1.bf16.msra.mxu0 %v126
  %175 = vmatprep.subr.bf16.mxu0 0
  %176 = vmatpush1.bf16.msra.mxu0 %v125
  %177 = vmatprep.subr.bf16.mxu0 0
  %178 = vmatpush2.bf16.msra.mxu0 0
  %179 = vmatprep.subr.bf16.mxu0 0
  %180 = vmatpush2.bf16.msra.mxu0 0
  %181 = vmatprep.subr.bf16.mxu0 0
  %182 = vmatpush2.bf16.msra.mxu0 0
  %183 = vmatprep.subr.bf16.mxu0 0
  %184 = vmatpush2.bf16.msra.mxu0 %v159
  %185 = vmatprep.subr.bf16.mxu0 0
  %186 = vmatpush2.bf16.msra.mxu0 %v136
  %187 = vmatprep.subr.bf16.mxu0 0
  %188 = vmatpush2.bf16.msra.mxu0 %v135
  %189 = vmatprep.subr.bf16.mxu0 0
  %190 = vmatpush2.bf16.msra.mxu0 %v134
  %191 = vmatprep.subr.bf16.mxu0 0
  %192 = vmatpush2.bf16.msra.mxu0 %v133
  %193 = vmatprep.mubr.bf16.mxu0 %v152
  %194 = vmatmul.mubr.bf16.gmra.mxu0 %v67
  %v195 = vpop.f32.mrf.mxu0
  %v196 = vadd.f32 %v53, %v195
  %v197 = vpop.f32.mrf.mxu0
  %v198 = vpop.f32.mrf.mxu0
  %v199 = vadd.f32 %v53, %v198
  %v200 = vpop.f32.mrf.mxu0
  %201 = vmatprep.mubr.bf16.mxu0 %v155
  %202 = vmatmul.mubr.bf16.gmra.mxu0 %v69
  %v203 = vpop.f32.mrf.mxu0
  %v204 = vadd.f32 %v53, %v203
  %v205 = vpop.f32.mrf.mxu0
  %v206 = vpop.f32.mrf.mxu0
  %v207 = vadd.f32 %v53, %v206
  %v208 = vpop.f32.mrf.mxu0
  %209 = vdwg.mxu0
  %v210 = vld [vmem:[%s3] sm:$0xf]
  %v211 = vld [vmem:[%s3 + $0x4] sm:$0xf]
  %v212 = vld [vmem:[%s3 + $0x8] sm:$0xf]
  %v213 = vld [vmem:[%s3 + $0xc] sm:$0x7]
  %v214 = vunpack.c.l.bf16 %v210
  %v215 = vunpack.c.l.bf16 %v211
  %v216 = vunpack.c.l.bf16 %v212
  %v217 = vunpack.c.l.bf16 %v213
  %v218 = vadd.f32 %v196, %v214
  %v219 = vadd.f32 %v199, %v215
  %v220 = vadd.f32 %v204, %v216
  %v221 = vadd.f32 %v207, %v217
  %v222 = vmax.f32 %v218, 0.0
  %v223 = vmax.f32 %v219, 0.0
  %v224 = vmax.f32 %v220, 0.0
  %v225 = vmax.f32 %v221, 0.0
  %226 = vst [vmem:[%s4] sm:$0xff] %v222
  %227 = vst [vmem:[%s4 + $0x8] sm:$0xff] %v223
  %228 = vst [vmem:[%s4 + $0x10] sm:$0xff] %v224
  %229 = vst [vmem:[%s4 + $0x18] sm:$0x3f] %v225
  // Predicated region
  $region18: #{res_block_transpose.3} parent=0 // pred_check
    _
  $region19: #{res_block_transpose.3} parent=0 // pred_check_branch
    %231 = sbr.rel (0) target = $region21
  $region20: #{res_block_transpose.3} parent=0 // pred_region
    _
  $region21: #{res_block_transpose.3} parent=0 // pred_fallthru
    _
  // Predicated region
  $region22: #{res_block_transpose.3} parent=0 // pred_check
    _
  $region23: #{res_block_transpose.3} parent=0 // pred_check_branch
    %233 = sbr.rel (0) target = $region25
  $region24: #{res_block_transpose.3} parent=0 // pred_region
    _
  $region25: #{res_block_transpose.3} parent=0 // pred_fallthru
    _

</llo_original>
